<compile_context>
chip_gen: v7x
topology: tpu7x:2x2x1
jax: 0.10.0
libtpu: 0.0.40
codegen_flags: <defaults>
</compile_context>

<pallas_src>
import jax
import jax.numpy as jnp
from jax.experimental import pallas as pl
from jax.experimental.pallas import tpu as pltpu


def _cdiv(a, b):
    return -(-a // b)


def _round_up(x, m):
    return _cdiv(x, m) * m


def _patch_embed_kernel(p_ref, w_ref, b_ref, o_ref):
    # (tm, K) @ (K, te) on the MXU with f32 accumulation, bias add in f32,
    # lane-dense store directly in the requested output dtype.
    acc = jnp.dot(p_ref[...], w_ref[...], preferred_element_type=jnp.float32)
    o_ref[...] = (acc + b_ref[...]).astype(o_ref.dtype)


def make_patch_embedding(conv_w, conv_b, patch_size,
                         compute_dtype=jnp.bfloat16, out_dtype=jnp.float32):
    """Build a jitted forward(x_nchw) for the 'standard' PatchEmbedding.

    conv_w: (E, C, P, P); conv_b: (E,).  Weight is flattened/transposed/cast once here
    (outside the jit) so no per-call transpose is paid.
    """
    E, C, P, P2 = conv_w.shape
    assert P == P2 == patch_size
    K = C * P * P

    # (E, C, P, P) -> (K, E): column k = (c, pr, pc), matching the patch layout below.
    w2d = jnp.transpose(conv_w.reshape(E, K)).astype(compute_dtype)     # (K, E)
    b2d = conv_b.reshape(1, E).astype(jnp.float32)

    # E tiling: single resident tile in the common case; for very wide E pick a
    # 128-multiple divisor of E (no padded columns, no post-kernel slice).
    te = E
    if E > 2048 and E % 128 == 0:
        for cand in range(1024, 127, -128):
            if E % cand == 0:
                te = cand
                break
    n_e = E // te

    in_bytes = jnp.dtype(compute_dtype).itemsize
    out_bytes = jnp.dtype(out_dtype).itemsize

    # Per-generation VMEM budget (tile working set): v5e/v6e have 128 MiB, v7x 64 MiB.
    try:
        vmem_cap = int(pltpu.get_tpu_info().vmem_capacity_bytes)
    except Exception:
        vmem_cap = 64 << 20                      # conservative (v7x-sized)
    budget = (44 << 20) if vmem_cap >= (100 << 20) else (22 << 20)

    # Weight/bias blocks never change when n_e == 1 -> single-buffer them (saves VMEM).
    w_bufs = 1 if n_e == 1 else 2
    w_bytes = w_bufs * K * te * in_bytes
    row_bytes = 2 * K * in_bytes + 2 * te * out_bytes   # dbl-buffered input + output / row
    tm_max = (max(budget - w_bytes, 1 << 20) // row_bytes) // 128 * 128
    tm_max = max(256, min(tm_max, 4096))

    if n_e == 1:
        w_spec = pl.BlockSpec((K, te), lambda i, j: (0, j), pipeline_mode=pl.Buffered(1))
        b_spec = pl.BlockSpec((1, te), lambda i, j: (0, j), pipeline_mode=pl.Buffered(1))
    else:
        w_spec = pl.BlockSpec((K, te), lambda i, j: (0, j))
        b_spec = pl.BlockSpec((1, te), lambda i, j: (0, j))

    @jax.jit
    def forward(x_nchw):
        B, Cx, H, W = x_nchw.shape
        assert Cx == C and H % P == 0 and W % P == 0
        Hp, Wp = H // P, W // P
        N = Hp * Wp
        M = B * N

        # --- patch extraction: one fused XLA transpose + cast (1 read of x, 1 write of
        # the (M, K) patch matrix); the leading reshape is a free contiguous split.
        # TODO(synk): pull this rearrangement into the kernel (see header note).
        patches = x_nchw.reshape(B, C, Hp, P, Wp, P)
        patches = jnp.transpose(patches, (0, 2, 4, 1, 3, 5)).reshape(M, K)
        patches = patches.astype(compute_dtype)

        # --- M tiling: balance tiles against M (no M padding; the ragged tail is a
        # Pallas partial block whose OOB rows are never written back), and keep >= 2
        # row tiles when M is large so both v7x TensorCores are used.
        n_m = _cdiv(M, tm_max)
        if M >= 512:
            n_m = max(n_m, 2)
        tm = M if n_m == 1 else _round_up(_cdiv(M, n_m), 128)
        grid = (_cdiv(M, tm), n_e)

        vmem_est = (2 * tm * K * in_bytes + w_bytes + 2 * te * 4
                    + 2 * tm * te * out_bytes)
        vmem_limit = int(min(max(vmem_est + (8 << 20), 32 << 20),
                             vmem_cap - (4 << 20)))

        out2d = pl.pallas_call(
            _patch_embed_kernel,
            out_shape=jax.ShapeDtypeStruct((M, E), out_dtype),
            grid=grid,
            in_specs=[
                pl.BlockSpec((tm, K), lambda i, j: (i, 0)),   # row stream (pipelined)
                w_spec,                                       # weight tile (resident)
                b_spec,                                       # bias tile (resident)
            ],
            out_specs=pl.BlockSpec((tm, te), lambda i, j: (i, j)),
            compiler_params=pltpu.CompilerParams(
                dimension_semantics=("parallel", "parallel"),
                vmem_limit_bytes=vmem_limit),
            cost_estimate=pl.CostEstimate(
                flops=2 * M * K * E,
                transcendentals=0,
                bytes_accessed=(M * K * in_bytes + K * E * in_bytes
                                + E * 4 + M * E * out_bytes)),
        )(patches, w2d, b2d)

        # Row order is already (hp, wp) == flatten(2).transpose(1, 2); pure free reshape.
        return out2d.reshape(B, N, E)

    return forward


if __name__ == "__main__":
    # Small shapes consistent with the module: in_channels=3 (fixed by the module),
    # img_size=16, patch_size=4 -> N=16 patches, embed_dim=32, batch=2.
    B, C, H, W = 2, 3, 16, 16
    P, E = 4, 32

    key = jax.random.PRNGKey(0)
    kx, kw, kb = jax.random.split(key, 3)
    x = jax.random.normal(kx, (B, C, H, W), dtype=jnp.float32)
    conv_w = jax.random.normal(kw, (E, C, P, P), dtype=jnp.float32) * 0.02
    conv_b = jax.random.normal(kb, (E,), dtype=jnp.float32) * 0.02

    # Reference: XLA conv (NCHW, stride=kernel=P) + flatten(2).transpose(1, 2).
    ref = jax.lax.conv_general_dilated(
        x, conv_w, window_strides=(P, P), padding="VALID",
        dimension_numbers=("NCHW", "OIHW", "NCHW"),
    ) + conv_b[None, :, None, None]
    ref = jnp.transpose(ref.reshape(B, E, -1), (0, 2, 1))
    N = (H // P) * (W // P)

    # f32 compute path: reference-accurate.
    out_f32 = jax.block_until_ready(
        make_patch_embedding(conv_w, conv_b, P, compute_dtype=jnp.float32)(x))
    assert out_f32.shape == (B, N, E)
    assert jnp.allclose(out_f32, ref, atol=1e-3, rtol=1e-3)

    # bf16 MXU path, f32 output (default): loose tolerance for bf16 operand rounding.
    out_bf16 = jax.block_until_ready(make_patch_embedding(conv_w, conv_b, P)(x))
    assert out_bf16.shape == (B, N, E) and out_bf16.dtype == jnp.float32
    assert jnp.allclose(out_bf16, ref, atol=3e-2, rtol=3e-2)

    # bf16 compute + bf16 output (halves the dominant HBM write stream).
    out_bb = jax.block_until_ready(
        make_patch_embedding(conv_w, conv_b, P, out_dtype=jnp.bfloat16)(x))
    assert out_bb.shape == (B, N, E) and out_bb.dtype == jnp.bfloat16
    assert jnp.allclose(out_bb.astype(jnp.float32), ref, atol=5e-2, rtol=5e-2)

    print("KERNEL_OK")
</pallas_src>

<mosaic_0001>
module attributes {stable_mosaic.version = 11 : i64} {
  func.func @_patch_embed_kernel(%arg0: i32, %arg1: i32, %arg2: memref<32x48xf32, #tpu.memory_space<vmem>>, %arg3: memref<48x32xf32, #tpu.memory_space<vmem>>, %arg4: memref<1x32xf32, #tpu.memory_space<vmem>>, %arg5: memref<32x32xf32, #tpu.memory_space<vmem>>) attributes {dimension_semantics = [#tpu.dimension_semantics<parallel>, #tpu.dimension_semantics<parallel>], iteration_bounds = array<i64: 1, 1>, scalar_prefetch = 0 : i64, scratch_operands = 0 : i64, tpu.core_type = #tpu.core_type<tc>, window_params = [{transform_indices = @transform_0, window_bounds = array<i64: 32, 48>}, {pipeline_mode = #tpu.pipeline_mode<synchronous>, transform_indices = @transform_1, window_bounds = array<i64: 48, 32>}, {pipeline_mode = #tpu.pipeline_mode<synchronous>, transform_indices = @transform_2, window_bounds = array<i64: 1, 32>}, {transform_indices = @transform_3, window_bounds = array<i64: 32, 32>}]} {
    %c0 = arith.constant 0 : index
    %c0_0 = arith.constant 0 : index
    %0 = vector.load %arg2[%c0, %c0_0] : memref<32x48xf32, #tpu.memory_space<vmem>>, vector<32x48xf32>
    %c0_1 = arith.constant 0 : index
    %c0_2 = arith.constant 0 : index
    %1 = vector.load %arg3[%c0_1, %c0_2] : memref<48x32xf32, #tpu.memory_space<vmem>>, vector<48x32xf32>
    %cst = arith.constant dense<0.000000e+00> : vector<32x32xf32>
    %2 = tpu.matmul %0, %1, %cst {dimension_numbers = #tpu.dot_dimension_numbers<[1], [0], [0], [1], [0, 0, 1, 1], [], []>} : vector<32x48xf32>, vector<48x32xf32>, vector<32x32xf32> -> vector<32x32xf32>
    %c0_3 = arith.constant 0 : index
    %c0_4 = arith.constant 0 : index
    %3 = vector.load %arg4[%c0_3, %c0_4] : memref<1x32xf32, #tpu.memory_space<vmem>>, vector<1x32xf32>
    %4 = vector.broadcast %3 : vector<1x32xf32> to vector<32x32xf32>
    %5 = arith.addf %2, %4 : vector<32x32xf32>
    %c0_5 = arith.constant 0 : index
    %c0_6 = arith.constant 0 : index
    %6 = vector.load %arg5[%c0_5, %c0_6] : memref<32x32xf32, #tpu.memory_space<vmem>>, vector<32x32xf32>
    tpu.vector_store %arg5[%c0_5, %c0_6], %5 {strides = array<i32>} : memref<32x32xf32, #tpu.memory_space<vmem>>, vector<32x32xf32>,
    return
  }
  func.func @transform_0(%arg0: i32, %arg1: i32) -> (i32, i32) {
    %c0_i32 = arith.constant 0 : i32
    %c0_i32_0 = arith.constant 0 : i32
    return %arg0, %c0_i32 : i32, i32
  }
  func.func @transform_1(%arg0: i32, %arg1: i32) -> (i32, i32) {
    %c0_i32 = arith.constant 0 : i32
    %c0_i32_0 = arith.constant 0 : i32
    return %c0_i32, %arg1 : i32, i32
  }
  func.func @transform_2(%arg0: i32, %arg1: i32) -> (i32, i32) {
    %c0_i32 = arith.constant 0 : i32
    %c0_i32_0 = arith.constant 0 : i32
    return %c0_i32, %arg1 : i32, i32
  }
  func.func @transform_3(%arg0: i32, %arg1: i32) -> (i32, i32) {
    %c0_i32 = arith.constant 0 : i32
    return %arg0, %arg1 : i32, i32
  }
}

</mosaic_0001>

<llo_original>
// kernel: forward.1
$region0: #{forward.1}
  #allocation0 [shape = 'u32[]', space=smem, size = 0x4, offset = 0x4, fixed_abs, tag = 'smem constant byte address 0x4 - core index']
  #allocation1 [shape = 'u32[144,128]{1,0:T(1,128)}', space=vmem, size = 0x12000, scoped, tag = 'internal scratch']
  %s0 = inlined_call_operand.vmem [shape: f32[32,48], index: 0, kind: input, shape index: {}]
  %s1 = inlined_call_operand.vmem [shape: f32[48,32], index: 1, kind: input, shape index: {}]
  %s2 = inlined_call_operand.vmem [shape: f32[1,32], index: 2, kind: input, shape index: {}]
  %s3 = inlined_call_operand.hbm [shape: f32[32,32], index: 3, kind: output, shape index: {}]
  %s4 = sld [smem:[#allocation0]]
  $region22: #{forward.1} parent=0
    _
  %s6 = ssub.s32 1, %s4
  %s7 = scalar_select 0, %s6, %s4
  $region1: #{forward.1} parent=0
    #allocation2 [shape = 'u8[16384]{0}', space=vmem, size = 0x4000, scoped, tag = 'output window, operand 0, single buffered']
    #allocation3 [shape = 's32[1]{0}', space=sflag, size = 0x4, scoped, tag = 'scoped memory for forward.1']
    %8 = vsyncpa [#allocation3], 0
    // Predicated region
    $region2: #{forward.1} parent=1 // pred_check
      _
    $region3: #{forward.1} parent=1 // pred_check_branch
      %10 = sbr.rel (0) target = $region5
    $region4: #{forward.1} parent=1 // pred_region
      _
    $region5: #{forward.1} parent=1 // pred_fallthru
      _
    // Predicated region
    $region6: #{forward.1} parent=1 // pred_check
      _
    $region7: #{forward.1} parent=1 // pred_check_branch
      %12 = sbr.rel (0) target = $region9
    $region8: #{forward.1} parent=1 // pred_region
      _
    $region9: #{forward.1} parent=1 // pred_fallthru
      _
    // Predicated region
    $region10: #{forward.1} parent=1 // pred_check
      _
    $region11: #{forward.1} parent=1 // pred_check_branch
      %14 = sbr.rel (0) target = $region13
    $region12: #{forward.1} parent=1 // pred_region
      _
    $region13: #{forward.1} parent=1 // pred_fallthru
      _
    %v15 = vld [vmem:[%s0] sm:$0xff]
    %v16 = vld [vmem:[%s0 + $0x8] sm:$0xff]
    %v17 = vld [vmem:[%s0 + $0x10] sm:$0xff]
    %v18 = vld [vmem:[%s0 + $0x18] sm:$0xff]
    %v19 = vld [vmem:[%s1] sm:$0xff]
    %v20 = vld [vmem:[%s1 + $0x8] sm:$0xff]
    %v21 = vld [vmem:[%s1 + $0x10] sm:$0xff]
    %v22 = vld [vmem:[%s1 + $0x18] sm:$0xff]
    %v23 = vld [vmem:[%s1 + $0x20] sm:$0xff]
    %v24 = vld [vmem:[%s1 + $0x28] sm:$0xff]
    %v25 = vld [vmem:[%s2] sm:$0x1]
    %v27 = vlaneseq
    %v28 = vshrl.u32 %v27, 7
    %v29 = vsub.s32 0, %v28
    %v30 = vrot.slane %v25, %v29
    %vm32 = vcmask 392192
    %v34 = vsel %vm32, %v15, 0
    %v37 = vsel %vm32, %v16, 0
    %v40 = vsel %vm32, %v17, 0
    %v43 = vsel %vm32, %v18, 0
    %45 = vmatprep.subr.mxu0 0.0
    %46 = vmatpush1.msra.mxu0 %v19
    %47 = vmatprep.subr.mxu0 0.0
    %48 = vmatpush1.msra.mxu0 %v20
    %49 = vmatprep.subr.mxu0 0.0
    %50 = vmatpush1.msra.mxu0 %v21
    %51 = vmatprep.subr.mxu0 0.0
    %52 = vmatpush1.msra.mxu0 %v22
    %53 = vmatprep.subr.mxu0 0.0
    %54 = vmatpush1.msra.mxu0 %v23
    %55 = vmatprep.subr.mxu0 0.0
    %56 = vmatpush1.msra.mxu0 %v24
    %57 = vmatprep.subr.mxu0 0.0
    %58 = vmatpush1.msra.mxu0 0.0
    %59 = vmatprep.subr.mxu0 0.0
    %60 = vmatpush1.msra.mxu0 0.0
    %61 = vmatprep.subr.mxu0 0.0
    %62 = vmatpush1.msra.mxu0 0.0
    %63 = vmatprep.subr.mxu0 0.0
    %64 = vmatpush1.msra.mxu0 0.0
    %65 = vmatprep.subr.mxu0 0.0
    %66 = vmatpush1.msra.mxu0 0.0
    %67 = vmatprep.subr.mxu0 0.0
    %68 = vmatpush1.msra.mxu0 0.0
    %69 = vmatprep.subr.mxu0 0.0
    %70 = vmatpush1.msra.mxu0 0.0
    %71 = vmatprep.subr.mxu0 0.0
    %72 = vmatpush1.msra.mxu0 0.0
    %73 = vmatprep.subr.mxu0 0.0
    %74 = vmatpush1.msra.mxu0 0.0
    %75 = vmatprep.subr.mxu0 0.0
    %76 = vmatpush1.msra.mxu0 0.0
    %77 = vmatprep.subr.mxu0 0.0
    %78 = vmatpush1.msra.mxu0 0.0
    %79 = vmatprep.subr.mxu0 0.0
    %80 = vmatpush1.msra.mxu0 0.0
    %81 = vmatprep.subr.mxu0 0.0
    %82 = vmatpush1.msra.mxu0 0.0
    %83 = vmatprep.subr.mxu0 0.0
    %84 = vmatpush1.msra.mxu0 0.0
    %85 = vmatprep.subr.mxu0 0.0
    %86 = vmatpush1.msra.mxu0 0.0
    %87 = vmatprep.subr.mxu0 0.0
    %88 = vmatpush1.msra.mxu0 0.0
    %89 = vmatprep.subr.mxu0 0.0
    %90 = vmatpush1.msra.mxu0 0.0
    %91 = vmatprep.subr.mxu0 0.0
    %92 = vmatpush1.msra.mxu0 0.0
    %93 = vmatprep.subr.mxu0 0.0
    %94 = vmatpush1.msra.mxu0 0.0
    %95 = vmatprep.subr.mxu0 0.0
    %96 = vmatpush1.msra.mxu0 0.0
    %97 = vmatprep.subr.mxu0 0.0
    %98 = vmatpush1.msra.mxu0 0.0
    %99 = vmatprep.subr.mxu0 0.0
    %100 = vmatpush1.msra.mxu0 0.0
    %101 = vmatprep.subr.mxu0 0.0
    %102 = vmatpush1.msra.mxu0 0.0
    %103 = vmatprep.subr.mxu0 0.0
    %104 = vmatpush1.msra.mxu0 0.0
    %105 = vmatprep.subr.mxu0 0.0
    %106 = vmatpush1.msra.mxu0 0.0
    %107 = vmatprep.subr.mxu0 0.0
    %108 = vmatpush1.msra.mxu0 0.0
    %109 = vmatprep.mubr.f32.mxu0 0.0
    %110 = vmatmul.mubr.f32.gmra.mrb[0].mxu0 %v34
    %v111 = vpop.f32.mrb[0].mxu0
    %v112 = vadd.f32 %v30, %v111
    %v113 = vpop.f32.mrb[0].mxu0
    %114 = vmatprep.mubr.f32.mxu0 0.0
    %115 = vmatmul.mubr.f32.gmra.mrb[0].mxu0 %v37
    %v116 = vpop.f32.mrb[0].mxu0
    %v117 = vadd.f32 %v30, %v116
    %v118 = vpop.f32.mrb[0].mxu0
    %119 = vmatprep.mubr.f32.mxu0 0.0
    %120 = vmatmul.mubr.f32.gmra.mrb[0].mxu0 %v40
    %v121 = vpop.f32.mrb[0].mxu0
    %v122 = vadd.f32 %v30, %v121
    %v123 = vpop.f32.mrb[0].mxu0
    %124 = vmatprep.mubr.f32.mxu0 0.0
    %125 = vmatmul.mubr.f32.gmra.mrb[0].mxu0 %v43
    %v126 = vpop.f32.mrb[0].mxu0
    %v127 = vadd.f32 %v30, %v126
    %v128 = vpop.f32.mrb[0].mxu0
    %129 = vdwg.mxu0
    %vm130 = vcmask 261120
    %131 = vst.msk [vmem:[#allocation2] sm:$0xff] %vm130, %v112
    %132 = vst.msk [vmem:[#allocation2 + $0x8] sm:$0xff] %vm130, %v117
    %133 = vst.msk [vmem:[#allocation2 + $0x10] sm:$0xff] %vm130, %v122
    %134 = vst.msk [vmem:[#allocation2 + $0x18] sm:$0xff] %vm130, %v127
    // Predicated region
    $region14: #{forward.1} parent=1 // pred_check
      _
    $region15: #{forward.1} parent=1 // pred_check_branch
      %136 = sbr.rel (0) target = $region17
    $region16: #{forward.1} parent=1 // pred_region
      %s138 = ssub.s32 512, 512
      %139 = vsyncadd [#allocation3], %s138
      %s140 = sshll.u32 [#allocation2], 4
      %s141 = int_to_ptr.vmem [resolvable:$true] %s140
      %146 = dma.vmem_to_hbm [thread:$0]  %s141, 512, %s3, [#allocation3], 128, 128, 8
    $region17: #{forward.1} parent=1 // pred_fallthru
      _
    // Predicated region
    $region18: #{forward.1} parent=1 // pred_check
      _
    $region19: #{forward.1} parent=1 // pred_check_branch
      %148 = sbr.rel (0) target = $region21
    $region20: #{forward.1} parent=1 // pred_region
      %149 = dma.done [#allocation3], 512
    $region21: #{forward.1} parent=1 // pred_fallthru
      _
    %150 = vsyncpa [#allocation3], 1

</llo_original>
